<compile_context>
chip_gen: v7x
topology: tpu7x:2x2x1
jax: 0.10.0
libtpu: 0.0.40
codegen_flags: <defaults>
</compile_context>

<pallas_src>
import functools

import jax
import jax.numpy as jnp
from jax.experimental import pallas as pl
from jax.experimental.pallas import tpu as pltpu


def _round_up(x, m):
    return ((x + m - 1) // m) * m


def _pad2(a, rows, cols):
    return jnp.pad(a, ((0, rows - a.shape[0]), (0, cols - a.shape[1])))


# ----------------------------- Pallas kernel --------------------------------
def _sage_aggr_kernel(a_ref, h_ref, r_ref, deg_ref, o_ref, acc_ref,
                      *, apply_relu: bool):
    """grid = (target row tiles, source K tiles); K axis is the reduction.

    out = relu( (A @ H) / deg + R ), with A = 0/1 edge counts (bf16),
    H = X_src @ Wl (bf16, pre-projected), R = X_tgt @ Wr + b (f32).
    """
    k = pl.program_id(1)

    @pl.when(k == 0)
    def _():
        acc_ref[...] = jnp.zeros_like(acc_ref)

    # Sum of projected neighbor features for this row tile (f32 accumulation).
    acc_ref[...] += jnp.dot(a_ref[...], h_ref[...],
                            preferred_element_type=jnp.float32)

    @pl.when(k == pl.num_programs(1) - 1)
    def _():
        # mean-normalize with an EUP reciprocal (separate VLIW slot), add the
        # pre-computed root term + bias, optional ReLU, cast, store.
        inv_deg = pl.reciprocal(deg_ref[...], approx=True)     # (tm, 1) f32
        out = acc_ref[...] * inv_deg + r_ref[...]
        if apply_relu:
            out = jnp.maximum(out, 0.0)
        o_ref[...] = out.astype(o_ref.dtype)


def sage_conv(adj_counts, deg, x, w_l, w_r, b, *, apply_relu, out_dtype):
    """One SAGEConv layer: out = mean_aggr(x_src) @ Wl + x[:n_tgt] @ Wr + b.

    adj_counts[t, s] = number of (s -> t) edges (exact integers, bf16-safe).
    deg[t, 0]        = max(sum_s adj_counts[t, s], 1)  (f32).
    """
    n_tgt, n_src = adj_counts.shape
    c_out = w_l.shape[1]
    c_out_p = _round_up(c_out, 128)          # lane-dense output / MXU N dim

    # ---- pre-projection (XLA): aggregation commutes with the linear maps ----
    h = jnp.dot(x[:n_src].astype(jnp.bfloat16), w_l.astype(jnp.bfloat16),
                preferred_element_type=jnp.float32)            # (n_src, c_out)
    r = jnp.dot(x[:n_tgt].astype(jnp.float32), w_r) + b        # (n_tgt, c_out)

    # ---- tile selection ----
    tm = min(512, _round_up(n_tgt, 16))      # target rows per tile (bf16 pack)
    if (_round_up(n_tgt, tm) // tm) < 2 and tm >= 32:
        tm = _round_up(tm // 2, 16)          # >=2 row tiles for v7x megacore
    tk = min(2048, _round_up(n_src, 128))    # source rows per reduction step
    n_tgt_p = _round_up(n_tgt, tm)
    n_src_p = _round_up(n_src, tk)

    # ---- padded, layout-friendly operands ----
    a_p = _pad2(adj_counts, n_tgt_p, n_src_p).astype(jnp.bfloat16)
    h_p = _pad2(h, n_src_p, c_out_p).astype(jnp.bfloat16)
    r_p = _pad2(r, n_tgt_p, c_out_p).astype(jnp.float32)
    deg_p = jnp.pad(deg.astype(jnp.float32),
                    ((0, n_tgt_p - n_tgt), (0, 0)), constant_values=1.0)

    grid = (n_tgt_p // tm, n_src_p // tk)

    out_bytes = jnp.dtype(out_dtype).itemsize
    flops = 2 * n_tgt_p * n_src_p * c_out_p
    bytes_accessed = (a_p.size * 2 + h_p.size * 2 + r_p.size * 4
                      + deg_p.size * 4 + n_tgt_p * c_out_p * out_bytes)

    out = pl.pallas_call(
        functools.partial(_sage_aggr_kernel, apply_relu=apply_relu),
        out_shape=jax.ShapeDtypeStruct((n_tgt_p, c_out_p), out_dtype),
        grid_spec=pltpu.PrefetchScalarGridSpec(
            num_scalar_prefetch=0,
            grid=grid,
            in_specs=[
                pl.BlockSpec((tm, tk), lambda i, k: (i, k)),          # A
                pl.BlockSpec((tk, c_out_p), lambda i, k: (k, 0)),     # H
                pl.BlockSpec((tm, c_out_p), lambda i, k: (i, 0)),     # R
                pl.BlockSpec((tm, 1), lambda i, k: (i, 0)),           # deg
            ],
            out_specs=pl.BlockSpec((tm, c_out_p), lambda i, k: (i, 0)),
            scratch_shapes=[pltpu.VMEM((tm, c_out_p), jnp.float32)],
        ),
        compiler_params=pltpu.CompilerParams(
            dimension_semantics=("parallel", "arbitrary"),
            vmem_limit_bytes=48 * 1024 * 1024,   # <= v7x 64 MiB, fine on v5e/v6e
        ),
        cost_estimate=pl.CostEstimate(flops=flops, transcendentals=0,
                                      bytes_accessed=bytes_accessed),
    )(a_p, h_p, r_p, deg_p)

    return out[:n_tgt, :c_out]


# ------------------------------- JAX glue ------------------------------------
def build_adj_and_deg(edge_index, num_src, num_tgt):
    """Dense edge-count adjacency A[t, s] and clamped in-degree deg[t, 1]."""
    src = edge_index[0]
    tgt = edge_index[1]
    a = jnp.zeros((num_tgt, num_src), jnp.float32).at[tgt, src].add(1.0)
    deg = jnp.maximum(a.sum(axis=1, keepdims=True), 1.0)   # isolated tgt -> 0 agg
    return a, deg


def sage_forward(x, adjs, params):
    """Mirrors SAGE.forward: two hops, relu after the first."""
    n_layers = len(adjs)
    for i, (edge_index, _e_id, size) in enumerate(adjs):
        num_src, num_tgt = size
        adj, deg = build_adj_and_deg(edge_index, num_src, num_tgt)
        w_l, w_r, b = params[i]
        is_last = (i == n_layers - 1)
        x = sage_conv(adj, deg, x, w_l, w_r, b,
                      apply_relu=(i == 0),
                      out_dtype=jnp.float32 if is_last else jnp.bfloat16)
    return x


def init_params(key, in_channels, hidden_channels, out_channels):
    """Deterministic SAGEConv params (stored transposed: [C_in, C_out])."""
    ks = jax.random.split(key, 6)

    def glorot(k, fan_in, fan_out):
        limit = (6.0 / (fan_in + fan_out)) ** 0.5
        return jax.random.uniform(k, (fan_in, fan_out), jnp.float32,
                                  -limit, limit)

    p0 = (glorot(ks[0], in_channels, hidden_channels),
          glorot(ks[1], in_channels, hidden_channels),
          jax.random.normal(ks[2], (hidden_channels,), jnp.float32) * 0.01)
    p1 = (glorot(ks[3], hidden_channels, out_channels),
          glorot(ks[4], hidden_channels, out_channels),
          jax.random.normal(ks[5], (out_channels,), jnp.float32) * 0.01)
    return [p0, p1]


# --------------------------------- main ---------------------------------------
if __name__ == "__main__":
    key = jax.random.PRNGKey(0)
    k_x, k_p, k_e0s, k_e0t, k_e1s, k_e1t = jax.random.split(key, 6)

    in_channels, hidden_channels, out_channels = 16, 32, 8
    num_nodes = 64                    # nodes in the sampled subgraph (hop-0 src)
    size0 = (64, 32)                  # (num_src, num_tgt) for hop 0
    size1 = (32, 16)                  # (num_src, num_tgt) for hop 1
    num_edges0, num_edges1 = 128, 64

    x = jax.random.normal(k_x, (num_nodes, in_channels), jnp.float32)

    edge_index0 = jnp.stack([
        jax.random.randint(k_e0s, (num_edges0,), 0, size0[0]),
        jax.random.randint(k_e0t, (num_edges0,), 0, size0[1]),
    ]).astype(jnp.int32)
    edge_index1 = jnp.stack([
        jax.random.randint(k_e1s, (num_edges1,), 0, size1[0]),
        jax.random.randint(k_e1t, (num_edges1,), 0, size1[1]),
    ]).astype(jnp.int32)

    adjs = [(edge_index0, None, size0), (edge_index1, None, size1)]

    params = init_params(k_p, in_channels, hidden_channels, out_channels)

    out = sage_forward(x, adjs, params)
    out = jax.block_until_ready(out)
    assert out.shape == (size1[1], out_channels)
    print("KERNEL_OK")
</pallas_src>

<mosaic_0001>
module attributes {stable_mosaic.version = 11 : i64} {
  func.func @_sage_aggr_kernel(%arg0: i32, %arg1: i32, %arg2: memref<16x128xbf16, #tpu.memory_space<vmem>>, %arg3: memref<128x128xbf16, #tpu.memory_space<vmem>>, %arg4: memref<16x128xf32, #tpu.memory_space<vmem>>, %arg5: memref<16x1xf32, #tpu.memory_space<vmem>>, %arg6: memref<16x128xbf16, #tpu.memory_space<vmem>>, %arg7: memref<16x128xf32, #tpu.memory_space<vmem>>) attributes {dimension_semantics = [#tpu.dimension_semantics<parallel>, #tpu.dimension_semantics<arbitrary>], iteration_bounds = array<i64: 2, 1>, scalar_prefetch = 0 : i64, scratch_operands = 1 : i64, tpu.core_type = #tpu.core_type<tc>, window_params = [{transform_indices = @transform_0, window_bounds = array<i64: 16, 128>}, {transform_indices = @transform_1, window_bounds = array<i64: 128, 128>}, {transform_indices = @transform_2, window_bounds = array<i64: 16, 128>}, {transform_indices = @transform_3, window_bounds = array<i64: 16, 1>}, {transform_indices = @transform_4, window_bounds = array<i64: 16, 128>}]} {
    %c0_i32 = arith.constant 0 : i32
    %0 = arith.cmpi eq, %arg1, %c0_i32 : i32
    %1 = arith.extui %0 : i1 to i32
    %c0_i32_0 = arith.constant 0 : i32
    %2 = arith.cmpi ne, %1, %c0_i32_0 : i32
    scf.if %2 {
      %cst_10 = arith.constant 0.000000e+00 : f32
      %12 = vector.broadcast %cst_10 : f32 to vector<16x128xf32>
      %c0_11 = arith.constant 0 : index
      %c0_12 = arith.constant 0 : index
      %13 = vector.load %arg7[%c0_11, %c0_12] : memref<16x128xf32, #tpu.memory_space<vmem>>, vector<16x128xf32>
      tpu.vector_store %arg7[%c0_11, %c0_12], %12 {strides = array<i32>} : memref<16x128xf32, #tpu.memory_space<vmem>>, vector<16x128xf32>,
    } else {
    }
    %c0 = arith.constant 0 : index
    %c0_1 = arith.constant 0 : index
    %3 = vector.load %arg7[%c0, %c0_1] : memref<16x128xf32, #tpu.memory_space<vmem>>, vector<16x128xf32>
    %c0_2 = arith.constant 0 : index
    %c0_3 = arith.constant 0 : index
    %4 = vector.load %arg2[%c0_2, %c0_3] : memref<16x128xbf16, #tpu.memory_space<vmem>>, vector<16x128xbf16>
    %c0_4 = arith.constant 0 : index
    %c0_5 = arith.constant 0 : index
    %5 = vector.load %arg3[%c0_4, %c0_5] : memref<128x128xbf16, #tpu.memory_space<vmem>>, vector<128x128xbf16>
    %cst = arith.constant dense<0.000000e+00> : vector<16x128xf32>
    %6 = tpu.matmul %4, %5, %cst {dimension_numbers = #tpu.dot_dimension_numbers<[1], [0], [0], [1], [0, 0, 1, 1], [], []>} : vector<16x128xbf16>, vector<128x128xbf16>, vector<16x128xf32> -> vector<16x128xf32>
    %7 = arith.addf %3, %6 : vector<16x128xf32>
    %c0_6 = arith.constant 0 : index
    %c0_7 = arith.constant 0 : index
    %8 = vector.load %arg7[%c0_6, %c0_7] : memref<16x128xf32, #tpu.memory_space<vmem>>, vector<16x128xf32>
    tpu.vector_store %arg7[%c0_6, %c0_7], %7 {strides = array<i32>} : memref<16x128xf32, #tpu.memory_space<vmem>>, vector<16x128xf32>,
    %c0_i32_8 = arith.constant 0 : i32
    %9 = arith.cmpi eq, %arg1, %c0_i32_8 : i32
    %10 = arith.extui %9 : i1 to i32
    %c0_i32_9 = arith.constant 0 : i32
    %11 = arith.cmpi ne, %10, %c0_i32_9 : i32
    scf.if %11 {
      %c0_10 = arith.constant 0 : index
      %c0_11 = arith.constant 0 : index
      %12 = vector.load %arg5[%c0_10, %c0_11] : memref<16x1xf32, #tpu.memory_space<vmem>>, vector<16x1xf32>
      %13 = tpu.reciprocal %12 {approx = true} : vector<16x1xf32> -> vector<16x1xf32>
      %c0_12 = arith.constant 0 : index
      %c0_13 = arith.constant 0 : index
      %14 = vector.load %arg7[%c0_12, %c0_13] : memref<16x128xf32, #tpu.memory_space<vmem>>, vector<16x128xf32>
      %15 = vector.broadcast %13 : vector<16x1xf32> to vector<16x128xf32>
      %16 = arith.mulf %14, %15 : vector<16x128xf32>
      %c0_14 = arith.constant 0 : index
      %c0_15 = arith.constant 0 : index
      %17 = vector.load %arg4[%c0_14, %c0_15] : memref<16x128xf32, #tpu.memory_space<vmem>>, vector<16x128xf32>
      %18 = arith.addf %16, %17 : vector<16x128xf32>
      %cst_16 = arith.constant 0.000000e+00 : f32
      %19 = vector.broadcast %cst_16 : f32 to vector<16x128xf32>
      %20 = arith.maximumf %18, %19 : vector<16x128xf32>
      %21 = arith.truncf %20 : vector<16x128xf32> to vector<16x128xbf16>
      %c0_17 = arith.constant 0 : index
      %c0_18 = arith.constant 0 : index
      %22 = vector.load %arg6[%c0_17, %c0_18] : memref<16x128xbf16, #tpu.memory_space<vmem>>, vector<16x128xbf16>
      tpu.vector_store %arg6[%c0_17, %c0_18], %21 {strides = array<i32>} : memref<16x128xbf16, #tpu.memory_space<vmem>>, vector<16x128xbf16>,
    } else {
    }
    return
  }
  func.func @transform_0(%arg0: i32, %arg1: i32) -> (i32, i32) {
    %c0_i32 = arith.constant 0 : i32
    return %arg0, %arg1 : i32, i32
  }
  func.func @transform_1(%arg0: i32, %arg1: i32) -> (i32, i32) {
    %c0_i32 = arith.constant 0 : i32
    %c0_i32_0 = arith.constant 0 : i32
    return %arg1, %c0_i32 : i32, i32
  }
  func.func @transform_2(%arg0: i32, %arg1: i32) -> (i32, i32) {
    %c0_i32 = arith.constant 0 : i32
    %c0_i32_0 = arith.constant 0 : i32
    return %arg0, %c0_i32 : i32, i32
  }
  func.func @transform_3(%arg0: i32, %arg1: i32) -> (i32, i32) {
    %c0_i32 = arith.constant 0 : i32
    %c0_i32_0 = arith.constant 0 : i32
    return %arg0, %c0_i32 : i32, i32
  }
  func.func @transform_4(%arg0: i32, %arg1: i32) -> (i32, i32) {
    %c0_i32 = arith.constant 0 : i32
    %c0_i32_0 = arith.constant 0 : i32
    return %arg0, %c0_i32 : i32, i32
  }
}

</mosaic_0001>

<llo_original>
// kernel: tpu_custom_call.1
$region0: #{tpu_custom_call.1}
  #allocation0 [shape = 'u32[]', space=smem, size = 0x4, offset = 0x4, fixed_abs, tag = 'smem constant byte address 0x4 - core index']
  #allocation1 [shape = 'u32[144,128]{1,0:T(1,128)}', space=vmem, size = 0x12000, scoped, tag = 'internal scratch']
  #allocation2 [shape = 'f32[16,128]{1,0:T(8,128)}', space=vmem, size = 0x2000, scoped, tag = 'scratch operand']
  %s0 = inlined_call_operand.hbm [shape: bf16[32,128], index: 0, kind: input, shape index: {}]
  %s1 = inlined_call_operand.hbm [shape: bf16[128,128], index: 1, kind: input, shape index: {}]
  %s2 = inlined_call_operand.vmem [shape: f32[32,128], index: 2, kind: input, shape index: {}]
  %s3 = inlined_call_operand.vmem [shape: f32[32,1], index: 3, kind: input, shape index: {}]
  %s4 = inlined_call_operand.hbm [shape: bf16[32,128], index: 4, kind: output, shape index: {}]
  %s5 = sld [smem:[#allocation0]]
  $region65: #{tpu_custom_call.1} parent=0
    _
  %s7 = ssub.s32 1, %s5
  %s8 = scalar_select 0, %s7, %s5
  $region1: #{tpu_custom_call.1} parent=0
    #allocation3 [shape = 'u8[8192]{0}', space=vmem, size = 0x2000, scoped, tag = 'input window, operand 0']
    #allocation4 [shape = 's32[2]{0}', space=sflag, size = 0x8, scoped, tag = 'scoped memory for tpu_custom_call.1']
    #allocation5 [shape = 's32[2]{0}', space=sflag, size = 0x8, scoped, tag = 'scoped memory for tpu_custom_call.1']
    #allocation6 [shape = 'u8[32768]{0}', space=vmem, size = 0x8000, scoped, tag = 'input window, operand 1, single buffered']
    #allocation7 [shape = 's32[1]{0}', space=sflag, size = 0x4, scoped, tag = 'scoped memory for tpu_custom_call.1']
    #allocation8 [shape = 'u8[8192]{0}', space=vmem, size = 0x2000, scoped, tag = 'output window, operand 0']
    %9 = vsyncpa [#allocation4], 0
    %s10 = scalar_lea.sflag [#allocation4], 1
    %11 = vsyncpa %s10, 0
    %12 = vsyncpa [#allocation7], 0
    %13 = vsyncpa [#allocation5], 0
    %s14 = scalar_lea.sflag [#allocation5], 1
    %15 = vsyncpa %s14, 0
    loop: start=0, step=1, limit=4
    $region2: #{tpu_custom_call.1} parent=1 // loop_pre_header
      _
    $region3: #{tpu_custom_call.1} parent=1 // loop_header
      %s17 = sphi 0, %s21
      %p18 = scmp.ge.s32.totalorder %s17, 4
      %s24 = sphi 0, %s36
      %s25 = sphi 0, %s32
      %s26 = sphi 0, %s24
      %s27 = sphi 0, %s25
      %s28 = sphi 0, %s26
      %s29 = sphi 0, %s27
      %s41 = sphi 0, %s43
      %s44 = sphi 0, %s41
      %s45 = sphi 0, %s44
      %s61 = sphi 0, %s45
      %s67 = sphi 0, %s69
      %s70 = sphi 0, %s67
      %s71 = sphi 0, %s70
      %s87 = sphi 0, %s71
      %s93 = sphi 0, %s95
      %s96 = sphi 0, %s93
      %s97 = sphi 0, %s96
      %s113 = sphi 0, %s97
      %s119 = sphi 0, %s121
      %s122 = sphi 0, %s119
      %s123 = sphi 0, %s122
      %s139 = sphi 0, %s123
      %s145 = sphi 0, %s147
      %s148 = sphi 0, %s145
      %s149 = sphi 0, %s148
      %s165 = sphi 0, %s149
    $region4: #{tpu_custom_call.1} parent=1 // loop_header_branch
      %20 = sbr.rel (%p18) target = $region8
    $region5: #{tpu_custom_call.1} parent=1 // loop_body
      %s22 = ssub.s32 %s17, 1
      %s23 = ssub.s32 %s17, 2
      %s30 = sadd.s32 1, %s25
      %p31 = scmp.ge.s32.totalorder %s30, 1
      %s32 = scalar_select %p31, 0, %s30
      %s33 = sadd.s32 1, %s24
      %s34 = scalar_select %p31, %s33, %s24
      %p35 = scmp.ge.s32.totalorder %s34, 2
      %s36 = scalar_select %p35, 0, %s34
      %s37 = ssub.s32 %s24, %s36
      %s38 = ssub.s32 %s25, %s32
      %s39 = sor.u32 %s37, %s38
      %p40 = scmp.eq.s32.totalorder %s39, 0
      %s42 = sadd.s32 %s41, 1
      %s43 = scalar_select %p40, %s41, %s42
      %p46 = pneg %p40
      %p47 = scmp.eq.s32.totalorder %s17, 1
      %p48 = por %p46, %p47
      %p49 = scmp.ne.s32.totalorder %s41, %s44
      %p50 = scmp.eq.s32.totalorder %s17, 0
      %p51 = por %p49, %p50
      %p52 = scmp.ne.s32.totalorder %s41, %s44
      %p53 = scmp.eq.s32.totalorder %s22, 1
      %p54 = por %p52, %p53
      %p55 = scmp.ne.s32.totalorder %s44, %s45
      %p56 = scmp.eq.s32.totalorder %s22, 0
      %p57 = por %p55, %p56
      %p58 = scmp.ne.s32.totalorder %s44, %s45
      %p59 = scmp.eq.s32.totalorder %s23, 1
      %p60 = por %p58, %p59
      %p62 = scmp.ne.s32.totalorder %s45, %s61
      %p63 = scmp.eq.s32.totalorder %s23, 0
      %p64 = por %p62, %p63
      %s65 = ssub.s32 %s25, %s32
      %p66 = scmp.eq.s32.totalorder %s65, 0
      %s68 = sadd.s32 %s67, 1
      %s69 = scalar_select %p66, %s67, %s68
      %p72 = pneg %p66
      %p73 = scmp.eq.s32.totalorder %s17, 1
      %p74 = por %p72, %p73
      %p75 = scmp.ne.s32.totalorder %s67, %s70
      %p76 = scmp.eq.s32.totalorder %s17, 0
      %p77 = por %p75, %p76
      %p78 = scmp.ne.s32.totalorder %s67, %s70
      %p79 = scmp.eq.s32.totalorder %s22, 1
      %p80 = por %p78, %p79
      %p81 = scmp.ne.s32.totalorder %s70, %s71
      %p82 = scmp.eq.s32.totalorder %s22, 0
      %p83 = por %p81, %p82
      %p84 = scmp.ne.s32.totalorder %s70, %s71
      %p85 = scmp.eq.s32.totalorder %s23, 1
      %p86 = por %p84, %p85
      %p88 = scmp.ne.s32.totalorder %s71, %s87
      %p89 = scmp.eq.s32.totalorder %s23, 0
      %p90 = por %p88, %p89
      %s91 = ssub.s32 %s24, %s36
      %p92 = scmp.eq.s32.totalorder %s91, 0
      %s94 = sadd.s32 %s93, 1
      %s95 = scalar_select %p92, %s93, %s94
      %p98 = pneg %p92
      %p99 = scmp.eq.s32.totalorder %s17, 1
      %p100 = por %p98, %p99
      %p101 = scmp.ne.s32.totalorder %s93, %s96
      %p102 = scmp.eq.s32.totalorder %s17, 0
      %p103 = por %p101, %p102
      %p104 = scmp.ne.s32.totalorder %s93, %s96
      %p105 = scmp.eq.s32.totalorder %s22, 1
      %p106 = por %p104, %p105
      %p107 = scmp.ne.s32.totalorder %s96, %s97
      %p108 = scmp.eq.s32.totalorder %s22, 0
      %p109 = por %p107, %p108
      %p110 = scmp.ne.s32.totalorder %s96, %s97
      %p111 = scmp.eq.s32.totalorder %s23, 1
      %p112 = por %p110, %p111
      %p114 = scmp.ne.s32.totalorder %s97, %s113
      %p115 = scmp.eq.s32.totalorder %s23, 0
      %p116 = por %p114, %p115
      %s117 = ssub.s32 %s24, %s36
      %p118 = scmp.eq.s32.totalorder %s117, 0
      %s120 = sadd.s32 %s119, 1
      %s121 = scalar_select %p118, %s119, %s120
      %p124 = pneg %p118
      %p125 = scmp.eq.s32.totalorder %s17, 1
      %p126 = por %p124, %p125
      %p127 = scmp.ne.s32.totalorder %s119, %s122
      %p128 = scmp.eq.s32.totalorder %s17, 0
      %p129 = por %p127, %p128
      %p130 = scmp.ne.s32.totalorder %s119, %s122
      %p131 = scmp.eq.s32.totalorder %s22, 1
      %p132 = por %p130, %p131
      %p133 = scmp.ne.s32.totalorder %s122, %s123
      %p134 = scmp.eq.s32.totalorder %s22, 0
      %p135 = por %p133, %p134
      %p136 = scmp.ne.s32.totalorder %s122, %s123
      %p137 = scmp.eq.s32.totalorder %s23, 1
      %p138 = por %p136, %p137
      %p140 = scmp.ne.s32.totalorder %s123, %s139
      %p141 = scmp.eq.s32.totalorder %s23, 0
      %p142 = por %p140, %p141
      %s143 = ssub.s32 %s24, %s36
      %p144 = scmp.eq.s32.totalorder %s143, 0
      %s146 = sadd.s32 %s145, 1
      %s147 = scalar_select %p144, %s145, %s146
      %p150 = pneg %p144
      %p151 = scmp.eq.s32.totalorder %s17, 1
      %p152 = por %p150, %p151
      %p153 = scmp.ne.s32.totalorder %s145, %s148
      %p154 = scmp.eq.s32.totalorder %s17, 0
      %p155 = por %p153, %p154
      %p156 = scmp.ne.s32.totalorder %s145, %s148
      %p157 = scmp.eq.s32.totalorder %s22, 1
      %p158 = por %p156, %p157
      %p159 = scmp.ne.s32.totalorder %s148, %s149
      %p160 = scmp.eq.s32.totalorder %s22, 0
      %p161 = por %p159, %p160
      %p162 = scmp.ne.s32.totalorder %s148, %s149
      %p163 = scmp.eq.s32.totalorder %s23, 1
      %p164 = por %p162, %p163
      %p166 = scmp.ne.s32.totalorder %s149, %s165
      %p167 = scmp.eq.s32.totalorder %s23, 0
      %p168 = por %p166, %p167
      %p169 = scmp.le.s32.totalorder 1, %s17
      %p170 = scmp.lt.s32.totalorder %s17, 3
      %p171 = pnand %p169, %p170
      %p172 = pneg %p171
      // Predicated region
      $region9: #{tpu_custom_call.1} parent=5 // pred_check
        _
      $region10: #{tpu_custom_call.1} parent=5 // pred_check_branch
        %174 = sbr.rel (%p171) target = $region12
      $region11: #{tpu_custom_call.1} parent=5 // pred_region
        %s175 = ssub.s32 %s17, 1
        // Predicated region
        $region13: #{tpu_custom_call.1} parent=11 // pred_check
          %p176 = pneg %p83
        $region14: #{tpu_custom_call.1} parent=11 // pred_check_branch
          %178 = sbr.rel (%p176) target = $region16
        $region15: #{tpu_custom_call.1} parent=11 // pred_region
          %s179 = smul.u32 16, %s27
          %s181 = ssub.s32 1024, 1024
          %182 = vsyncadd [#allocation7], %s181
          %s183 = smul.addr %s179, 64
          %s184 = scalar_lea.hbm %s1, %s183
          %s185 = sshll.u32 [#allocation6], 4
          %s186 = int_to_ptr.vmem [resolvable:$true] %s185
          %191 = dma.hbm_to_vmem [thread:$0]  %s184, 1024, %s186, [#allocation7], 64, 64, 4
        $region16: #{tpu_custom_call.1} parent=11 // pred_fallthru
          _
      $region12: #{tpu_custom_call.1} parent=5 // pred_fallthru
        _
      %p192 = scmp.lt.s32.totalorder %s17, 2
      // Predicated region
      $region17: #{tpu_custom_call.1} parent=5 // pred_check
        %p193 = pneg %p192
      $region18: #{tpu_custom_call.1} parent=5 // pred_check_branch
        %195 = sbr.rel (%p193) target = $region20
      $region19: #{tpu_custom_call.1} parent=5 // pred_region
        // Predicated region
        $region21: #{tpu_custom_call.1} parent=19 // pred_check
          %p196 = pneg %p51
        $region22: #{tpu_custom_call.1} parent=19 // pred_check_branch
          %198 = sbr.rel (%p196) target = $region24
        $region23: #{tpu_custom_call.1} parent=19 // pred_region
          %s199 = sand.u32 %s41, 1
          %s200 = scalar_lea.sflag [#allocation4], %s199
          %s201 = sand.u32 %s41, 1
          %s202 = smul.addr %s201, 8
          %s203 = scalar_lea.vmem [#allocation3], %s202
          %s204 = smul.u32 2, %s24
          %s206 = ssub.s32 128, 128
          %207 = vsyncadd %s200, %s206
          %s208 = sadd.s32 %s25, %s204
          %s209 = smul.addr %s208, 64
          %s210 = scalar_lea.hbm %s0, %s209
          %s211 = sshll.u32 %s203, 4
          %s212 = int_to_ptr.vmem [resolvable:$true] %s211
          %217 = dma.hbm_to_vmem [thread:$0]  %s210, 128, %s212, %s200, 64, 64, 4
        $region24: #{tpu_custom_call.1} parent=19 // pred_fallthru
          _
        // Predicated region
        $region25: #{tpu_custom_call.1} parent=19 // pred_check
          %p218 = pneg %p103
        $region26: #{tpu_custom_call.1} parent=19 // pred_check_branch
          %220 = sbr.rel (%p218) target = $region28
        $region27: #{tpu_custom_call.1} parent=19 // pred_region
          %s221 = smul.u32 2, %s24
          %p222 = scmp.lt.s32.totalorder %s221, 3
          %s223 = scalar_select %p222, %s221, 3
          %s224 = smul.addr %s223, 8
          %s225 = scalar_lea.vmem %s2, %s224
          %s226 = smul.u32 2, %s24
        $region28: #{tpu_custom_call.1} parent=19 // pred_fallthru
          _
        // Predicated region
        $region29: #{tpu_custom_call.1} parent=19 // pred_check
          %p227 = pneg %p129
        $region30: #{tpu_custom_call.1} parent=19 // pred_check_branch
          %229 = sbr.rel (%p227) target = $region32
        $region31: #{tpu_custom_call.1} parent=19 // pred_region
          %s230 = smul.u32 2, %s24
          %p231 = scmp.lt.s32.totalorder %s230, 3
          %s232 = scalar_select %p231, %s230, 3
          %s233 = smul.addr %s232, 8
          %s234 = scalar_lea.vmem %s3, %s233
          %s235 = smul.u32 2, %s24
        $region32: #{tpu_custom_call.1} parent=19 // pred_fallthru
          _
      $region20: #{tpu_custom_call.1} parent=5 // pred_fallthru
        _
      %p236 = scmp.le.s32.totalorder 1, %s17
      %p237 = scmp.lt.s32.totalorder %s17, 3
      %p238 = pnand %p236, %p237
      %p239 = pneg %p238
      // Predicated region
      $region33: #{tpu_custom_call.1} parent=5 // pred_check
        _
      $region34: #{tpu_custom_call.1} parent=5 // pred_check_branch
        %241 = sbr.rel (%p238) target = $region36
      $region35: #{tpu_custom_call.1} parent=5 // pred_region
        %s242 = ssub.s32 %s17, 1
        %s243 = sand.u32 %s44, 1
        %s244 = scalar_lea.sflag [#allocation4], %s243
        %s245 = sand.u32 %s44, 1
        %s246 = smul.addr %s245, 8
        %s247 = scalar_lea.vmem [#allocation3], %s246
        // Predicated region
        $region37: #{tpu_custom_call.1} parent=35 // pred_check
          %p248 = pneg %p57
        $region38: #{tpu_custom_call.1} parent=35 // pred_check_branch
          %250 = sbr.rel (%p248) target = $region40
        $region39: #{tpu_custom_call.1} parent=35 // pred_region
          %251 = dma.done %s244, 128
        $region40: #{tpu_custom_call.1} parent=35 // pred_fallthru
          _
        // Predicated region
        $region41: #{tpu_custom_call.1} parent=35 // pred_check
          %p252 = pneg %p83
        $region42: #{tpu_custom_call.1} parent=35 // pred_check_branch
          %254 = sbr.rel (%p252) target = $region44
        $region43: #{tpu_custom_call.1} parent=35 // pred_region
          %255 = dma.done [#allocation7], 1024
        $region44: #{tpu_custom_call.1} parent=35 // pred_fallthru
          _
        %s256 = sand.u32 %s44, 1
        %s257 = scalar_lea.sflag [#allocation4], %s256
        %s258 = sand.u32 %s44, 1
        %s259 = smul.addr %s258, 8
        %s260 = scalar_lea.vmem [#allocation3], %s259
        %p261 = pneg %p57
        %p262 = pneg %p54
        %p263 = pneg %p83
        %p264 = pneg %p80
        %s265 = smul.u32 2, %s26
        %p266 = scmp.lt.s32.totalorder %s265, 3
        %s267 = scalar_select %p266, %s265, 3
        %s268 = smul.addr %s267, 8
        %s269 = scalar_lea.vmem %s2, %s268
        %p270 = pneg %p109
        %p271 = pneg %p106
        %s272 = smul.u32 2, %s26
        %p273 = scmp.lt.s32.totalorder %s272, 3
        %s274 = scalar_select %p273, %s272, 3
        %s275 = smul.addr %s274, 8
        %s276 = scalar_lea.vmem %s3, %s275
        %p277 = pneg %p135
        %p278 = pneg %p132
        %p279 = pneg %p161
        %p280 = pneg %p158
        %s281 = sand.u32 %s148, 1
        %s282 = scalar_lea.sflag [#allocation5], %s281
        %s283 = sand.u32 %s148, 1
        %s284 = smul.addr %s283, 8
        %s285 = scalar_lea.vmem [#allocation8], %s284
        %s286 = smul.u32 2, %s26
        %s287 = smul.u32 16, %s27
        %s288 = smul.u32 2, %s26
        %p289 = scmp.lt.s32.totalorder %s288, 3
        %s290 = scalar_select %p289, %s288, 3
        %s291 = smul.addr %s290, 8
        %s292 = scalar_lea.vmem %s2, %s291
        %s293 = smul.u32 2, %s26
        %s294 = smul.u32 2, %s26
        %p295 = scmp.lt.s32.totalorder %s294, 3
        %s296 = scalar_select %p295, %s294, 3
        %s297 = smul.addr %s296, 8
        %s298 = scalar_lea.vmem %s3, %s297
        %s299 = smul.u32 2, %s26
        %s300 = smul.u32 2, %s26
        %p302 = scmp.eq.s32.totalorder %s27, 0
        // Predicated region
        $region45: #{tpu_custom_call.1} parent=35 // pred_check
          %p303 = pneg %p302
        $region46: #{tpu_custom_call.1} parent=35 // pred_check_branch
          %305 = sbr.rel (%p303) target = $region48
        $region47: #{tpu_custom_call.1} parent=35 // pred_region
          %306 = vst [vmem:[#allocation2] sm:$0xff] 0.0
          %307 = vst [vmem:[#allocation2 + $0x8] sm:$0xff] 0.0
        $region48: #{tpu_custom_call.1} parent=35 // pred_fallthru
          _
        %v308 = vld [vmem:[#allocation2] sm:$0xff]
        %v309 = vld [vmem:[#allocation2 + $0x8] sm:$0xff]
        %v310 = vld [vmem:[%s247] sm:$0xf]
        %v311 = vld [vmem:[%s247 + $0x4] sm:$0xf]
        %v312 = vld [vmem:[#allocation6] sm:$0xf]
        %v313 = vld [vmem:[#allocation6 + $0x4] sm:$0xf]
        %v314 = vld [vmem:[#allocation6 + $0x8] sm:$0xf]
        %v315 = vld [vmem:[#allocation6 + $0xc] sm:$0xf]
        %v316 = vld [vmem:[#allocation6 + $0x10] sm:$0xf]
        %v317 = vld [vmem:[#allocation6 + $0x14] sm:$0xf]
        %v318 = vld [vmem:[#allocation6 + $0x18] sm:$0xf]
        %v319 = vld [vmem:[#allocation6 + $0x1c] sm:$0xf]
        %v320 = vld [vmem:[#allocation6 + $0x20] sm:$0xf]
        %v321 = vld [vmem:[#allocation6 + $0x24] sm:$0xf]
        %v322 = vld [vmem:[#allocation6 + $0x28] sm:$0xf]
        %v323 = vld [vmem:[#allocation6 + $0x2c] sm:$0xf]
        %v324 = vld [vmem:[#allocation6 + $0x30] sm:$0xf]
        %v325 = vld [vmem:[#allocation6 + $0x34] sm:$0xf]
        %v326 = vld [vmem:[#allocation6 + $0x38] sm:$0xf]
        %v327 = vld [vmem:[#allocation6 + $0x3c] sm:$0xf]
        %v330 = vunpack.c.l.b16 %v310
        %v331 = vunpack.c.l.b16 %v311
        %v332 = vpack.c.b16 %v331, %v330
        %v350 = vunpack.c.l.b16 %v312
        %v351 = vunpack.c.l.b16 %v313
        %v352 = vunpack.c.l.b16 %v314
        %v353 = vunpack.c.l.b16 %v315
        %v354 = vunpack.c.l.b16 %v316
        %v355 = vunpack.c.l.b16 %v317
        %v356 = vunpack.c.l.b16 %v318
        %v357 = vunpack.c.l.b16 %v319
        %v358 = vunpack.c.l.b16 %v320
        %v359 = vunpack.c.l.b16 %v321
        %v360 = vunpack.c.l.b16 %v322
        %v361 = vunpack.c.l.b16 %v323
        %v362 = vunpack.c.l.b16 %v324
        %v363 = vunpack.c.l.b16 %v325
        %v364 = vunpack.c.l.b16 %v326
        %v365 = vunpack.c.l.b16 %v327
        %v366 = vpack.c.b16 %v351, %v350
        %v367 = vpack.c.b16 %v353, %v352
        %v368 = vpack.c.b16 %v355, %v354
        %v369 = vpack.c.b16 %v357, %v356
        %v370 = vpack.c.b16 %v359, %v358
        %v371 = vpack.c.b16 %v361, %v360
        %v372 = vpack.c.b16 %v363, %v362
        %v373 = vpack.c.b16 %v365, %v364
        %382 = vmatprep.subr.bf16.mxu0 0
        %383 = vmatpush1.bf16.msra.mxu0 %v366
        %384 = vmatprep.subr.bf16.mxu0 0
        %385 = vmatpush1.bf16.msra.mxu0 %v367
        %386 = vmatprep.subr.bf16.mxu0 0
        %387 = vmatpush1.bf16.msra.mxu0 %v368
        %388 = vmatprep.subr.bf16.mxu0 0
        %389 = vmatpush1.bf16.msra.mxu0 %v369
        %390 = vmatprep.subr.bf16.mxu0 0
        %391 = vmatpush1.bf16.msra.mxu0 %v370
        %392 = vmatprep.subr.bf16.mxu0 0
        %393 = vmatpush1.bf16.msra.mxu0 %v371
        %394 = vmatprep.subr.bf16.mxu0 0
        %395 = vmatpush1.bf16.msra.mxu0 %v372
        %396 = vmatprep.subr.bf16.mxu0 0
        %397 = vmatpush1.bf16.msra.mxu0 %v373
        %398 = vmatprep.subr.bf16.mxu0 0
        %399 = vmatpush1.bf16.msra.mxu0 0
        %400 = vmatprep.subr.bf16.mxu0 0
        %401 = vmatpush1.bf16.msra.mxu0 0
        %402 = vmatprep.subr.bf16.mxu0 0
        %403 = vmatpush1.bf16.msra.mxu0 0
        %404 = vmatprep.subr.bf16.mxu0 0
        %405 = vmatpush1.bf16.msra.mxu0 0
        %406 = vmatprep.subr.bf16.mxu0 0
        %407 = vmatpush1.bf16.msra.mxu0 0
        %408 = vmatprep.subr.bf16.mxu0 0
        %409 = vmatpush1.bf16.msra.mxu0 0
        %410 = vmatprep.subr.bf16.mxu0 0
        %411 = vmatpush1.bf16.msra.mxu0 0
        %412 = vmatprep.subr.bf16.mxu0 0
        %413 = vmatpush1.bf16.msra.mxu0 0
        %414 = vmatprep.mubr.bf16.mxu0 0
        %415 = vmatmul.mubr.bf16.gmra.mrb[0].mxu0 %v332
        %v416 = vpop.f32.mrb[0].mxu0
        %v417 = vadd.f32 0.0, %v416
        %v418 = vpop.f32.mrb[0].mxu0
        %v419 = vpop.f32.mrb[0].mxu0
        %v420 = vadd.f32 0.0, %v419
        %v421 = vpop.f32.mrb[0].mxu0
        %422 = vdwg.mxu0
        %v423 = vadd.f32 %v308, %v417
        %v424 = vadd.f32 %v309, %v420
        %425 = vst [vmem:[#allocation2] sm:$0xff] %v423
        %426 = vst [vmem:[#allocation2 + $0x8] sm:$0xff] %v424
        // Predicated region
        $region49: #{tpu_custom_call.1} parent=35 // pred_check
          %p427 = pneg %p302
        $region50: #{tpu_custom_call.1} parent=35 // pred_check_branch
          %429 = sbr.rel (%p427) target = $region52
        $region51: #{tpu_custom_call.1} parent=35 // pred_region
          %v430 = vld [vmem:[%s298] sm:$0xff]
          %v431 = vld [vmem:[%s298 + $0x8] sm:$0xff]
          %v432 = vrcp.pop %v430
          %v433 = vrcp.pop %v431
          %v434 = vld [vmem:[#allocation2] sm:$0xff]
          %v435 = vld [vmem:[#allocation2 + $0x8] sm:$0xff]
          %437 = vset.pattern.permute.xlu0 0
          %438 = vperm.xlu0 %437, %v432
          %v439 = vpop.permute.xlu0 %438
          %442 = vset.pattern.permute.xlu0 0
          %443 = vperm.xlu0 %442, %v433
          %v444 = vpop.permute.xlu0 %443
          %v446 = vmul.f32 %v434, %v439
          %v447 = vmul.f32 %v435, %v444
          %v448 = vld [vmem:[%s292] sm:$0xff]
          %v449 = vld [vmem:[%s292 + $0x8] sm:$0xff]
          %v450 = vadd.f32 %v446, %v448
          %v451 = vadd.f32 %v447, %v449
          %v452 = vmax.f32 %v450, 0.0
          %v453 = vmax.f32 %v451, 0.0
          %v454 = vpack.c.bf16 %v453, %v452
          %v456 = vunpack.c.l.b16 %v454
          %v457 = vunpack.c.h.b16 %v454
          %v458 = vpack.c.b16 %v456, %v456
          %v459 = vpack.c.b16 %v457, %v457
          %462 = vst [vmem:[%s285] sm:$0xf] %v458
          %463 = vst [vmem:[%s285 + $0x4] sm:$0xf] %v459
        $region52: #{tpu_custom_call.1} parent=35 // pred_fallthru
          _
        %s464 = sand.u32 %s148, 1
        %s465 = scalar_lea.sflag [#allocation5], %s464
        %s466 = sand.u32 %s148, 1
        %s467 = smul.addr %s466, 8
        %s468 = scalar_lea.vmem [#allocation8], %s467
        // Predicated region
        $region53: #{tpu_custom_call.1} parent=35 // pred_check
          %p469 = pneg %p158
        $region54: #{tpu_custom_call.1} parent=35 // pred_check_branch
          %471 = sbr.rel (%p469) target = $region56
        $region55: #{tpu_custom_call.1} parent=35 // pred_region
          %s472 = smul.u32 2, %s26
          %s474 = ssub.s32 128, 128
          %475 = vsyncadd %s465, %s474
          %s476 = smul.addr %s472, 64
          %s477 = scalar_lea.hbm %s4, %s476
          %s478 = sshll.u32 %s468, 4
          %s479 = int_to_ptr.vmem [resolvable:$true] %s478
          %484 = dma.vmem_to_hbm [thread:$0]  %s479, 128, %s477, %s465, 64, 64, 4
        $region56: #{tpu_custom_call.1} parent=35 // pred_fallthru
          _
      $region36: #{tpu_custom_call.1} parent=5 // pred_fallthru
        _
      %p485 = scmp.le.s32.totalorder 2, %s17
      // Predicated region
      $region57: #{tpu_custom_call.1} parent=5 // pred_check
        %p486 = pneg %p485
      $region58: #{tpu_custom_call.1} parent=5 // pred_check_branch
        %488 = sbr.rel (%p486) target = $region60
      $region59: #{tpu_custom_call.1} parent=5 // pred_region
        %s489 = ssub.s32 %s17, 2
        // Predicated region
        $region61: #{tpu_custom_call.1} parent=59 // pred_check
          %p490 = pneg %p164
        $region62: #{tpu_custom_call.1} parent=59 // pred_check_branch
          %492 = sbr.rel (%p490) target = $region64
        $region63: #{tpu_custom_call.1} parent=59 // pred_region
          %s493 = sand.u32 %s149, 1
          %s494 = scalar_lea.sflag [#allocation5], %s493
          %s495 = sand.u32 %s149, 1
          %s496 = smul.addr %s495, 8
          %s497 = scalar_lea.vmem [#allocation8], %s496
          %498 = dma.done %s494, 128
        $region64: #{tpu_custom_call.1} parent=59 // pred_fallthru
          _
      $region60: #{tpu_custom_call.1} parent=5 // pred_fallthru
        _
    $region6: #{tpu_custom_call.1} parent=1 // loop_footer
      %s21 = sadd.s32 1, %s17
    $region7: #{tpu_custom_call.1} parent=1 // loop_footer_branch
      %16 = sbr.rel target = $region3
    $region8: #{tpu_custom_call.1} parent=1 // loop_exit
      _
    %499 = vsyncpa [#allocation4], 1
    %s500 = scalar_lea.sflag [#allocation4], 1
    %501 = vsyncpa %s500, 1
    %502 = vsyncpa [#allocation7], 1
    %503 = vsyncpa [#allocation5], 1
    %s504 = scalar_lea.sflag [#allocation5], 1
    %505 = vsyncpa %s504, 1

</llo_original>
